<compile_context>
chip_gen: v5e
topology: v5e:2x2
jax: 0.10.0
libtpu: 0.0.40
codegen_flags: <defaults>
</compile_context>

<pallas_src>
import numpy as np

import jax
import jax.numpy as jnp
from jax.experimental import pallas as pl
from jax.experimental.pallas import tpu as pltpu

_MIB = 1024 * 1024


def _round_up(x, m):
    return (x + m - 1) // m * m


def _vmem_capacity_bytes():
    # Per-TensorCore VMEM.  Fall back to the smallest value (v7x: 64 MiB) if
    # the trace-time query is unavailable so budgets stay conservative.
    try:
        return int(pltpu.get_tpu_info().vmem_capacity_bytes)
    except Exception:
        return 64 * _MIB


def _vmem_limit(resident_bytes, cap):
    # Resident set + headroom for compiler scratch, capped below physical VMEM.
    want = int(resident_bytes) + 16 * _MIB
    return int(max(32 * _MIB, min(want, cap - 2 * _MIB)))


def _prep_linear_params(w, b, compute_dtype, pad_to=128):
    """Pad the out-dim of (in, out) weights to a lane multiple and cast.

    No-op (no copies) when the weight/bias are already padded and in their
    kernel dtypes, so calling it per-forward on pre-processed params is free.
    """
    din, dout = w.shape
    dpad = _round_up(max(dout, pad_to), pad_to)
    if (w.dtype == compute_dtype and dout == dpad
            and b.dtype == jnp.float32 and b.shape == (1, dpad)):
        return w, b, dpad
    w_p = jnp.zeros((din, dpad), compute_dtype).at[:, :dout].set(
        w.astype(compute_dtype))
    b_p = jnp.zeros((1, dpad), jnp.float32).at[:, :dout].set(
        b.reshape(1, dout).astype(jnp.float32))
    return w_p, b_p, dpad


def _pick_m_tile(M, tm_cap):
    # Prefer a tile that divides M exactly (no hidden jnp.pad copy of the full
    # activation); otherwise pad minimally.
    for c in (512, 256, 128):
        if c <= tm_cap and M % c == 0:
            return c, M
    if M <= tm_cap:
        tm = _round_up(M, 8)
        return tm, tm
    tm = min(256, tm_cap)
    return tm, _round_up(M, tm)


# ----------------------------- vl_linear kernels ----------------------------

def _vl_linear_resident_kernel(x_ref, w_ref, b_ref, o_ref):
    # W / bias BlockSpec indices are constant across the grid -> DMA'd once,
    # stay VMEM-resident.  x is cast to bf16 in-kernel; accumulate in f32.
    y = jnp.dot(x_ref[...].astype(w_ref.dtype), w_ref[...],
                preferred_element_type=jnp.float32)
    o_ref[...] = (y + b_ref[...]).astype(o_ref.dtype)


def _vl_linear_tiled_kernel(x_ref, w_ref, b_ref, o_ref, acc_ref):
    # grid = (M tiles, N tiles, K tiles); K is innermost/"arbitrary".
    @pl.when(pl.program_id(2) == 0)
    def _():
        acc_ref[...] = jnp.zeros_like(acc_ref)

    acc_ref[...] += jnp.dot(x_ref[...].astype(w_ref.dtype), w_ref[...],
                            preferred_element_type=jnp.float32)

    @pl.when(pl.program_id(2) == pl.num_programs(2) - 1)
    def _():
        o_ref[...] = (acc_ref[...] + b_ref[...]).astype(o_ref.dtype)


def vl_linear(x, w, b, *, dl_out=None, out_dtype=jnp.bfloat16,
              compute_dtype=jnp.bfloat16, force_k_tiling=False,
              block_k=512, block_n=512):
    """nn.Linear(visual_size, language_size) applied to [B, P, Dv]."""
    B, P, Dv = x.shape
    if dl_out is None:
        dl_out = w.shape[1]
    w_p, b_p, dl_pad = _prep_linear_params(w, b, compute_dtype)

    M = B * P
    x2 = x.reshape(M, Dv)                     # no wrapper-side cast of x
    x_bytes = x2.dtype.itemsize
    w_elem = np.dtype(compute_dtype).itemsize
    out_bytes = np.dtype(out_dtype).itemsize

    cap = _vmem_capacity_bytes()
    tm_cap = 512 if cap >= 100 * _MIB else 256   # bigger tiles on 128 MiB parts

    tm, m_pad = _pick_m_tile(M, tm_cap)
    # Give both v7x TensorCores work when there would be a single M tile.
    if m_pad // tm == 1 and tm >= 64:
        half = _round_up((tm + 1) // 2, 8)
        tm, m_pad = half, 2 * half
    if m_pad != M:
        x2 = jnp.pad(x2, ((0, m_pad - M), (0, 0)))

    # ---- residency decision ----
    w_bytes = Dv * dl_pad * w_elem
    resident_a = (2 * w_bytes + 2 * dl_pad * 4
                  + 2 * tm * Dv * x_bytes
                  + 2 * tm * dl_pad * out_bytes)
    weight_budget = min(cap // 5, 16 * _MIB)
    use_resident = (not force_k_tiling and w_bytes <= weight_budget
                    and resident_a + 8 * _MIB <= cap)

    if use_resident:
        out = pl.pallas_call(
            _vl_linear_resident_kernel,
            out_shape=jax.ShapeDtypeStruct((m_pad, dl_pad), out_dtype),
            grid_spec=pltpu.PrefetchScalarGridSpec(
                num_scalar_prefetch=0,
                grid=(m_pad // tm,),
                in_specs=[
                    pl.BlockSpec((tm, Dv), lambda i: (i, 0)),
                    pl.BlockSpec((Dv, dl_pad), lambda i: (0, 0)),  # resident
                    pl.BlockSpec((1, dl_pad), lambda i: (0, 0)),   # resident
                ],
                out_specs=pl.BlockSpec((tm, dl_pad), lambda i: (i, 0)),
            ),
            compiler_params=pltpu.CompilerParams(
                dimension_semantics=("parallel",),
                vmem_limit_bytes=_vmem_limit(resident_a, cap),
            ),
        )(x2, w_p, b_p)
    else:
        # K tile: largest multiple of 128 (<= block_k) that divides Dv.
        tk = Dv
        for c in (block_k, 384, 256, 128):
            if c <= Dv and Dv % c == 0:
                tk = c
                break
        # N tile: largest multiple of 128 (<= block_n) that divides Dl_pad.
        tn = dl_pad
        for c in (block_n, 256, 128):
            if c <= dl_pad and dl_pad % c == 0:
                tn = c
                break

        resident_b = (tm * tn * 4                     # f32 accumulator
                      + 2 * tm * tk * x_bytes
                      + 2 * tk * tn * w_elem
                      + 2 * tn * 4
                      + 2 * tm * tn * out_bytes)
        out = pl.pallas_call(
            _vl_linear_tiled_kernel,
            out_shape=jax.ShapeDtypeStruct((m_pad, dl_pad), out_dtype),
            grid_spec=pltpu.PrefetchScalarGridSpec(
                num_scalar_prefetch=0,
                grid=(m_pad // tm, dl_pad // tn, Dv // tk),
                in_specs=[
                    pl.BlockSpec((tm, tk), lambda i, j, k: (i, k)),
                    pl.BlockSpec((tk, tn), lambda i, j, k: (k, j)),
                    pl.BlockSpec((1, tn), lambda i, j, k: (0, j)),
                ],
                out_specs=pl.BlockSpec((tm, tn), lambda i, j, k: (i, j)),
                scratch_shapes=[pltpu.VMEM((tm, tn), jnp.float32)],
            ),
            compiler_params=pltpu.CompilerParams(
                dimension_semantics=("parallel", "parallel", "arbitrary"),
                vmem_limit_bytes=_vmem_limit(resident_b, cap),
            ),
        )(x2, w_p, b_p)

    return out[:M, :dl_out].reshape(B, P, dl_out)


# -------------------------- pseudo-label head kernel ------------------------

def _pseudo_head_kernel(cls_ref, w_ref, b_ref, o_ref):
    # cls_ref (B, Dv) resident across the grid; grid walks N tiles of W.
    logits = jnp.dot(cls_ref[...].astype(w_ref.dtype), w_ref[...],
                     preferred_element_type=jnp.float32)
    o_ref[...] = (logits + b_ref[...]).astype(o_ref.dtype)


def pseudo_label_head(image_feature, w, b, *, n_out=None,
                      compute_dtype=jnp.bfloat16, out_dtype=jnp.float32,
                      block_n=512):
    """nn.Linear(visual_size, pseudo_label_num) on image_feature[:, 0, :]."""
    B, P, Dv = image_feature.shape
    if n_out is None:
        n_out = w.shape[1]
    w_p, b_p, n_pad = _prep_linear_params(w, b, compute_dtype)

    # Only the CLS token is copied to VMEM, not the whole [B, P, Dv] tensor.
    cls = image_feature[:, 0, :]                                    # (B, Dv)

    tn = n_pad
    for c in (block_n, 256, 128):
        if c <= n_pad and n_pad % c == 0:
            tn = c
            break

    cap = _vmem_capacity_bytes()
    resident = (2 * B * Dv * cls.dtype.itemsize
                + 2 * Dv * tn * np.dtype(compute_dtype).itemsize
                + 2 * tn * 4
                + 2 * B * tn * np.dtype(out_dtype).itemsize)

    out = pl.pallas_call(
        _pseudo_head_kernel,
        out_shape=jax.ShapeDtypeStruct((B, n_pad), out_dtype),
        grid_spec=pltpu.PrefetchScalarGridSpec(
            num_scalar_prefetch=0,
            grid=(n_pad // tn,),
            in_specs=[
                pl.BlockSpec((B, Dv), lambda j: (0, 0)),     # CLS, resident
                pl.BlockSpec((Dv, tn), lambda j: (0, j)),
                pl.BlockSpec((1, tn), lambda j: (0, j)),
            ],
            out_specs=pl.BlockSpec((B, tn), lambda j: (0, j)),
        ),
        compiler_params=pltpu.CompilerParams(
            dimension_semantics=("parallel",),
            vmem_limit_bytes=_vmem_limit(resident, cap),
        ),
    )(cls, w_p, b_p)
    return out[:, :n_out]


# ------------------------------ ViT5P wrapper -------------------------------

class ViT5P:
    """JAX/Pallas re-implementation of the ViT5P forward pass.

    Kernel-facing weights are pre-cast (bf16) and lane-padded once at
    construction, so per-forward cost is just the Pallas kernels themselves.
    """

    def __init__(self, visual_size, language_size, pseudo_label_num=None,
                 key=jax.random.PRNGKey(0), compute_dtype=jnp.bfloat16):
        self.visual_size = visual_size
        self.language_size = language_size
        self.compute_dtype = compute_dtype
        self.pseudo_mode = pseudo_label_num is not None and pseudo_label_num > 0

        k1, k2, k3, k4 = jax.random.split(key, 4)
        bound = 1.0 / (visual_size ** 0.5)
        if self.visual_size != self.language_size:
            # nn.Linear(visual_size, language_size): stored transposed (Dv, Dl)
            # so the kernel computes x @ W.  f32 master copies for reference;
            # padded bf16/f32 kernel copies built once here.
            self.w_vl = jax.random.uniform(
                k1, (visual_size, language_size), jnp.float32, -bound, bound)
            self.b_vl = jax.random.uniform(
                k2, (1, language_size), jnp.float32, -bound, bound)
            self.w_vl_k, self.b_vl_k, _ = _prep_linear_params(
                self.w_vl, self.b_vl, compute_dtype)
        if self.pseudo_mode:
            self.pseudo_label_num = pseudo_label_num
            self.w_ph = jax.random.uniform(
                k3, (visual_size, pseudo_label_num), jnp.float32, -bound, bound)
            self.b_ph = jax.random.uniform(
                k4, (1, pseudo_label_num), jnp.float32, -bound, bound)
            self.w_ph_k, self.b_ph_k, _ = _prep_linear_params(
                self.w_ph, self.b_ph, compute_dtype)

    def get_image_feature(self, pixel_values):
        # TODO(synk): self.visual_model (ViT backbone) is an external submodule
        # not defined in this module; treated as identity on already-embedded
        # patch features [B, P, Dv].
        return pixel_values

    def forward(self, pixel_values):
        image_feature = self.get_image_feature(pixel_values)   # [B, P, Dv]

        if self.pseudo_mode:
            image_logits = pseudo_label_head(
                image_feature, self.w_ph_k, self.b_ph_k,
                n_out=self.pseudo_label_num, compute_dtype=self.compute_dtype)
        else:
            image_logits = None

        if self.visual_size != self.language_size:
            image_feature = vl_linear(
                image_feature, self.w_vl_k, self.b_vl_k,
                dl_out=self.language_size, compute_dtype=self.compute_dtype)

        # TODO(synk): self.language_model.forward(inputs_embeds=image_feature)
        # is an external T5 stack with no definition here; the projected
        # embeddings fed to it are returned as the stand-in "outputs".
        outputs = image_feature
        return outputs, image_logits


# ---------------------------------- main ------------------------------------

if __name__ == "__main__":
    B, P, Dv, Dl, N = 2, 16, 256, 384, 16

    key = jax.random.PRNGKey(0)
    k_x, k_params = jax.random.split(key)
    pixel_values = jax.random.normal(k_x, (B, P, Dv), jnp.float32)

    model = ViT5P(visual_size=Dv, language_size=Dl, pseudo_label_num=N,
                  key=k_params)

    outputs, image_logits = model.forward(pixel_values)
    outputs = jax.block_until_ready(outputs)
    image_logits = jax.block_until_ready(image_logits)

    # Plain-JAX reference using the same bf16 rounding of x / W as the kernels.
    xb = pixel_values.astype(jnp.bfloat16).astype(jnp.float32)
    wvl = model.w_vl.astype(jnp.bfloat16).astype(jnp.float32)
    wph = model.w_ph.astype(jnp.bfloat16).astype(jnp.float32)
    ref_proj = (xb.reshape(-1, Dv) @ wvl + model.b_vl).reshape(B, P, Dl)
    ref_logits = xb[:, 0, :] @ wph + model.b_ph

    assert outputs.shape == (B, P, Dl)
    assert outputs.dtype == jnp.bfloat16          # bf16 writeback by design
    assert image_logits.shape == (B, N)
    # Projection is stored in bf16 -> allow ~1 bf16 ulp on top of input rounding.
    assert jnp.allclose(outputs.astype(jnp.float32), ref_proj,
                        atol=3e-2, rtol=3e-2)
    assert jnp.allclose(image_logits, ref_logits, atol=3e-3, rtol=3e-3)

    # Also exercise the K/N-tiled fallback path (used when W_vl is too big to
    # stay VMEM-resident) at the same small shapes.
    tiled = vl_linear(pixel_values, model.w_vl_k, model.b_vl_k, dl_out=Dl,
                      force_k_tiling=True, block_k=128, block_n=128)
    tiled = jax.block_until_ready(tiled)
    assert tiled.shape == (B, P, Dl)
    assert jnp.allclose(tiled.astype(jnp.float32), ref_proj,
                        atol=3e-2, rtol=3e-2)

    print("KERNEL_OK")
</pallas_src>

<mosaic_0001>
module attributes {stable_mosaic.version = 11 : i64} {
  func.func @_pseudo_head_kernel(%arg0: i32, %arg1: memref<2x256xf32, #tpu.memory_space<vmem>>, %arg2: memref<256x128xbf16, #tpu.memory_space<vmem>>, %arg3: memref<1x128xf32, #tpu.memory_space<vmem>>, %arg4: memref<2x128xf32, #tpu.memory_space<vmem>>) attributes {dimension_semantics = [#tpu.dimension_semantics<parallel>], iteration_bounds = array<i64: 1>, scalar_prefetch = 0 : i64, scratch_operands = 0 : i64, tpu.core_type = #tpu.core_type<tc>, window_params = [{pipeline_mode = #tpu.pipeline_mode<synchronous>, transform_indices = @transform_0, window_bounds = array<i64: 2, 256>}, {transform_indices = @transform_1, window_bounds = array<i64: 256, 128>}, {transform_indices = @transform_2, window_bounds = array<i64: 1, 128>}, {transform_indices = @transform_3, window_bounds = array<i64: 2, 128>}]} {
    %c0 = arith.constant 0 : index
    %c0_0 = arith.constant 0 : index
    %0 = vector.load %arg1[%c0, %c0_0] : memref<2x256xf32, #tpu.memory_space<vmem>>, vector<2x256xf32>
    %1 = arith.truncf %0 : vector<2x256xf32> to vector<2x256xbf16>
    %c0_1 = arith.constant 0 : index
    %c0_2 = arith.constant 0 : index
    %2 = vector.load %arg2[%c0_1, %c0_2] : memref<256x128xbf16, #tpu.memory_space<vmem>>, vector<256x128xbf16>
    %cst = arith.constant dense<0.000000e+00> : vector<2x128xf32>
    %3 = tpu.matmul %1, %2, %cst {dimension_numbers = #tpu.dot_dimension_numbers<[1], [0], [0], [1], [0, 0, 1, 1], [], []>} : vector<2x256xbf16>, vector<256x128xbf16>, vector<2x128xf32> -> vector<2x128xf32>
    %c0_3 = arith.constant 0 : index
    %c0_4 = arith.constant 0 : index
    %4 = vector.load %arg3[%c0_3, %c0_4] : memref<1x128xf32, #tpu.memory_space<vmem>>, vector<1x128xf32>
    %5 = vector.broadcast %4 : vector<1x128xf32> to vector<2x128xf32>
    %6 = arith.addf %3, %5 : vector<2x128xf32>
    %c0_5 = arith.constant 0 : index
    %c0_6 = arith.constant 0 : index
    %7 = vector.load %arg4[%c0_5, %c0_6] : memref<2x128xf32, #tpu.memory_space<vmem>>, vector<2x128xf32>
    tpu.vector_store %arg4[%c0_5, %c0_6], %6 {strides = array<i32>} : memref<2x128xf32, #tpu.memory_space<vmem>>, vector<2x128xf32>,
    return
  }
  func.func @transform_0(%arg0: i32) -> (i32, i32) {
    %c0_i32 = arith.constant 0 : i32
    %c0_i32_0 = arith.constant 0 : i32
    %c0_i32_1 = arith.constant 0 : i32
    return %c0_i32, %c0_i32_0 : i32, i32
  }
  func.func @transform_1(%arg0: i32) -> (i32, i32) {
    %c0_i32 = arith.constant 0 : i32
    %c0_i32_0 = arith.constant 0 : i32
    return %c0_i32, %arg0 : i32, i32
  }
  func.func @transform_2(%arg0: i32) -> (i32, i32) {
    %c0_i32 = arith.constant 0 : i32
    %c0_i32_0 = arith.constant 0 : i32
    return %c0_i32, %arg0 : i32, i32
  }
  func.func @transform_3(%arg0: i32) -> (i32, i32) {
    %c0_i32 = arith.constant 0 : i32
    %c0_i32_0 = arith.constant 0 : i32
    return %c0_i32, %arg0 : i32, i32
  }
}

</mosaic_0001>

<llo_original>
// kernel: tpu_custom_call.1
$region0: #{tpu_custom_call.1}
  #allocation0 [shape = 'u32[]', space=smem, size = 0x4, offset = 0x4, fixed_abs, tag = 'smem constant byte address 0x4 - core index']
  #allocation1 [shape = 'u32[72,128]{1,0:T(1,128)}', space=vmem, size = 0x9000, scoped, tag = 'internal scratch']
  %s0 = inlined_call_operand.hbm [shape: f32[2,256], index: 0, kind: input, shape index: {}]
  %s1 = inlined_call_operand.hbm [shape: bf16[256,128], index: 1, kind: input, shape index: {}]
  %s2 = inlined_call_operand.vmem [shape: f32[1,128], index: 2, kind: input, shape index: {}]
  %s3 = inlined_call_operand.hbm [shape: f32[2,128], index: 3, kind: output, shape index: {}]
  %s4 = sld [smem:[#allocation0]]
  $region30: #{tpu_custom_call.1} parent=0
    _
  %s6 = ssub.s32 1, %s4
  %s7 = scalar_select 0, %s6, %s4
  $region1: #{tpu_custom_call.1} parent=0
    #allocation2 [shape = 'u8[2048]{0}', space=vmem, size = 0x800, scoped, tag = 'input window, operand 0, single buffered']
    #allocation3 [shape = 's32[1]{0}', space=sflag, size = 0x4, scoped, tag = 'scoped memory for tpu_custom_call.1']
    #allocation4 [shape = 's32[1]{0}', space=sflag, size = 0x4, scoped, tag = 'scoped memory for tpu_custom_call.1']
    #allocation5 [shape = 'u8[65536]{0}', space=vmem, size = 0x10000, scoped, tag = 'input window, operand 1, single buffered']
    #allocation6 [shape = 's32[1]{0}', space=sflag, size = 0x4, scoped, tag = 'scoped memory for tpu_custom_call.1']
    #allocation7 [shape = 'u8[1024]{0}', space=vmem, size = 0x400, scoped, tag = 'output window, operand 0, single buffered']
    %8 = vsyncpa [#allocation3], 0
    %9 = vsyncpa [#allocation6], 0
    %10 = vsyncpa [#allocation4], 0
    // Predicated region
    $region2: #{tpu_custom_call.1} parent=1 // pred_check
      _
    $region3: #{tpu_custom_call.1} parent=1 // pred_check_branch
      %12 = sbr.rel (0) target = $region5
    $region4: #{tpu_custom_call.1} parent=1 // pred_region
      %14 = vsyncadd [#allocation3], 0
      %s16 = sshll.u32 %s0, 4
      %s17 = int_to_ptr.hbm [resolvable:$true] %s16
      %s18 = sshll.u32 [#allocation2], 4
      %s19 = int_to_ptr.vmem [resolvable:$true] %s18
      %21 = dma.hbm_to_vmem [thread:$0]  %s17, 64, %s19, [#allocation3]
    $region5: #{tpu_custom_call.1} parent=1 // pred_fallthru
      _
    // Predicated region
    $region6: #{tpu_custom_call.1} parent=1 // pred_check
      _
    $region7: #{tpu_custom_call.1} parent=1 // pred_check_branch
      %23 = sbr.rel (0) target = $region9
    $region8: #{tpu_custom_call.1} parent=1 // pred_region
      %25 = vsyncadd [#allocation6], 0
      %s26 = sshll.u32 %s1, 4
      %s27 = int_to_ptr.hbm [resolvable:$true] %s26
      %s28 = sshll.u32 [#allocation5], 4
      %s29 = int_to_ptr.vmem [resolvable:$true] %s28
      %34 = dma.hbm_to_vmem [thread:$0]  %s27, 2048, %s29, [#allocation6], 64, 64, 4
    $region9: #{tpu_custom_call.1} parent=1 // pred_fallthru
      _
    // Predicated region
    $region10: #{tpu_custom_call.1} parent=1 // pred_check
      _
    $region11: #{tpu_custom_call.1} parent=1 // pred_check_branch
      %36 = sbr.rel (0) target = $region13
    $region12: #{tpu_custom_call.1} parent=1 // pred_region
      _
    $region13: #{tpu_custom_call.1} parent=1 // pred_fallthru
      _
    // Predicated region
    $region14: #{tpu_custom_call.1} parent=1 // pred_check
      _
    $region15: #{tpu_custom_call.1} parent=1 // pred_check_branch
      %38 = sbr.rel (0) target = $region17
    $region16: #{tpu_custom_call.1} parent=1 // pred_region
      %40 = dma.done [#allocation3], 64
    $region17: #{tpu_custom_call.1} parent=1 // pred_fallthru
      _
    // Predicated region
    $region18: #{tpu_custom_call.1} parent=1 // pred_check
      _
    $region19: #{tpu_custom_call.1} parent=1 // pred_check_branch
      %42 = sbr.rel (0) target = $region21
    $region20: #{tpu_custom_call.1} parent=1 // pred_region
      %44 = dma.done [#allocation6], 2048
    $region21: #{tpu_custom_call.1} parent=1 // pred_fallthru
      _
    %v45 = vld [vmem:[#allocation2] sm:$0xf]
    %47 = vst [vmem:[#allocation1] ss:$4 sm:$0xff] %v45
    %v48 = vld.sshfl [vmem:[#allocation1] sm:$0xff pattern:$0x73625140]
    %v49 = vld.sshfl [vmem:[#allocation1 + $0x8] sm:$0xff pattern:$0x73625140]
    %v52 = vpack.c.bf16 %v48, %v48
    %v53 = vpack.c.bf16 %v49, %v49
    %v54 = vld [vmem:[#allocation5] sm:$0xf]
    %v55 = vld [vmem:[#allocation5 + $0x4] sm:$0xf]
    %v56 = vld [vmem:[#allocation5 + $0x8] sm:$0xf]
    %v57 = vld [vmem:[#allocation5 + $0xc] sm:$0xf]
    %v58 = vld [vmem:[#allocation5 + $0x10] sm:$0xf]
    %v59 = vld [vmem:[#allocation5 + $0x14] sm:$0xf]
    %v60 = vld [vmem:[#allocation5 + $0x18] sm:$0xf]
    %v61 = vld [vmem:[#allocation5 + $0x1c] sm:$0xf]
    %v62 = vld [vmem:[#allocation5 + $0x20] sm:$0xf]
    %v63 = vld [vmem:[#allocation5 + $0x24] sm:$0xf]
    %v64 = vld [vmem:[#allocation5 + $0x28] sm:$0xf]
    %v65 = vld [vmem:[#allocation5 + $0x2c] sm:$0xf]
    %v66 = vld [vmem:[#allocation5 + $0x30] sm:$0xf]
    %v67 = vld [vmem:[#allocation5 + $0x34] sm:$0xf]
    %v68 = vld [vmem:[#allocation5 + $0x38] sm:$0xf]
    %v69 = vld [vmem:[#allocation5 + $0x3c] sm:$0xf]
    %v70 = vld [vmem:[#allocation5 + $0x40] sm:$0xf]
    %v71 = vld [vmem:[#allocation5 + $0x44] sm:$0xf]
    %v72 = vld [vmem:[#allocation5 + $0x48] sm:$0xf]
    %v73 = vld [vmem:[#allocation5 + $0x4c] sm:$0xf]
    %v74 = vld [vmem:[#allocation5 + $0x50] sm:$0xf]
    %v75 = vld [vmem:[#allocation5 + $0x54] sm:$0xf]
    %v76 = vld [vmem:[#allocation5 + $0x58] sm:$0xf]
    %v77 = vld [vmem:[#allocation5 + $0x5c] sm:$0xf]
    %v78 = vld [vmem:[#allocation5 + $0x60] sm:$0xf]
    %v79 = vld [vmem:[#allocation5 + $0x64] sm:$0xf]
    %v80 = vld [vmem:[#allocation5 + $0x68] sm:$0xf]
    %v81 = vld [vmem:[#allocation5 + $0x6c] sm:$0xf]
    %v82 = vld [vmem:[#allocation5 + $0x70] sm:$0xf]
    %v83 = vld [vmem:[#allocation5 + $0x74] sm:$0xf]
    %v84 = vld [vmem:[#allocation5 + $0x78] sm:$0xf]
    %v85 = vld [vmem:[#allocation5 + $0x7c] sm:$0xf]
    %v86 = vld [vmem:[%s2] sm:$0x1]
    %v88 = vperm.slane %v86, 0
    %v122 = vunpack.c.l.b16 %v54
    %v123 = vunpack.c.l.b16 %v55
    %v124 = vunpack.c.l.b16 %v56
    %v125 = vunpack.c.l.b16 %v57
    %v126 = vunpack.c.l.b16 %v58
    %v127 = vunpack.c.l.b16 %v59
    %v128 = vunpack.c.l.b16 %v60
    %v129 = vunpack.c.l.b16 %v61
    %v130 = vunpack.c.l.b16 %v62
    %v131 = vunpack.c.l.b16 %v63
    %v132 = vunpack.c.l.b16 %v64
    %v133 = vunpack.c.l.b16 %v65
    %v134 = vunpack.c.l.b16 %v66
    %v135 = vunpack.c.l.b16 %v67
    %v136 = vunpack.c.l.b16 %v68
    %v137 = vunpack.c.l.b16 %v69
    %v138 = vunpack.c.l.b16 %v70
    %v139 = vunpack.c.l.b16 %v71
    %v140 = vunpack.c.l.b16 %v72
    %v141 = vunpack.c.l.b16 %v73
    %v142 = vunpack.c.l.b16 %v74
    %v143 = vunpack.c.l.b16 %v75
    %v144 = vunpack.c.l.b16 %v76
    %v145 = vunpack.c.l.b16 %v77
    %v146 = vunpack.c.l.b16 %v78
    %v147 = vunpack.c.l.b16 %v79
    %v148 = vunpack.c.l.b16 %v80
    %v149 = vunpack.c.l.b16 %v81
    %v150 = vunpack.c.l.b16 %v82
    %v151 = vunpack.c.l.b16 %v83
    %v152 = vunpack.c.l.b16 %v84
    %v153 = vunpack.c.l.b16 %v85
    %v154 = vpack.c.b16 %v123, %v122
    %v155 = vpack.c.b16 %v125, %v124
    %v156 = vpack.c.b16 %v127, %v126
    %v157 = vpack.c.b16 %v129, %v128
    %v158 = vpack.c.b16 %v131, %v130
    %v159 = vpack.c.b16 %v133, %v132
    %v160 = vpack.c.b16 %v135, %v134
    %v161 = vpack.c.b16 %v137, %v136
    %v162 = vpack.c.b16 %v139, %v138
    %v163 = vpack.c.b16 %v141, %v140
    %v164 = vpack.c.b16 %v143, %v142
    %v165 = vpack.c.b16 %v145, %v144
    %v166 = vpack.c.b16 %v147, %v146
    %v167 = vpack.c.b16 %v149, %v148
    %v168 = vpack.c.b16 %v151, %v150
    %v169 = vpack.c.b16 %v153, %v152
    %186 = vmatpush.bf16.msra.mxu0 %v161
    %187 = vmatpush.bf16.msra.mxu0 %v160
    %188 = vmatpush.bf16.msra.mxu0 %v159
    %189 = vmatpush.bf16.msra.mxu0 %v158
    %190 = vmatpush.bf16.msra.mxu0 %v157
    %191 = vmatpush.bf16.msra.mxu0 %v156
    %192 = vmatpush.bf16.msra.mxu0 %v155
    %193 = vmatpush.bf16.msra.mxu0 %v154
    %194 = vmatmul.bf16.gmra.mxu0 %v52
    %v195 = vpop.f32.mrf.mxu0
    %v196 = vadd.f32 %v88, %v195
    %v197 = vpop.f32.mrf.mxu0
    %198 = vdwg.mxu0
    %199 = vmatpush.bf16.msra.mxu0 %v169
    %200 = vmatpush.bf16.msra.mxu0 %v168
    %201 = vmatpush.bf16.msra.mxu0 %v167
    %202 = vmatpush.bf16.msra.mxu0 %v166
    %203 = vmatpush.bf16.msra.mxu0 %v165
    %204 = vmatpush.bf16.msra.mxu0 %v164
    %205 = vmatpush.bf16.msra.mxu0 %v163
    %206 = vmatpush.bf16.msra.mxu0 %v162
    %207 = vmatmul.bf16.gmra.mxu0 %v53
    %v208 = vpop.f32.mrf.mxu0
    %v209 = vadd.f32 %v196, %v208
    %v210 = vpop.f32.mrf.mxu0
    %211 = vdwg.mxu0
    %212 = vst [vmem:[#allocation7] sm:$0x3] %v209
    // Predicated region
    $region22: #{tpu_custom_call.1} parent=1 // pred_check
      _
    $region23: #{tpu_custom_call.1} parent=1 // pred_check_branch
      %214 = sbr.rel (0) target = $region25
    $region24: #{tpu_custom_call.1} parent=1 // pred_region
      %216 = vsyncadd [#allocation4], 0
      %s218 = sshll.u32 [#allocation7], 4
      %s219 = int_to_ptr.vmem [resolvable:$true] %s218
      %s220 = sshll.u32 %s3, 4
      %s221 = int_to_ptr.hbm [resolvable:$true] %s220
      %223 = dma.vmem_to_hbm [thread:$0]  %s219, 32, %s221, [#allocation4]
    $region25: #{tpu_custom_call.1} parent=1 // pred_fallthru
      _
    // Predicated region
    $region26: #{tpu_custom_call.1} parent=1 // pred_check
      _
    $region27: #{tpu_custom_call.1} parent=1 // pred_check_branch
      %225 = sbr.rel (0) target = $region29
    $region28: #{tpu_custom_call.1} parent=1 // pred_region
      %227 = dma.done [#allocation4], 32
    $region29: #{tpu_custom_call.1} parent=1 // pred_fallthru
      _
    %228 = vsyncpa [#allocation3], 1
    %229 = vsyncpa [#allocation6], 1
    %230 = vsyncpa [#allocation4], 1

</llo_original>
